<compile_context>
chip_gen: v5e
topology: v5e:2x2
jax: 0.10.0
libtpu: 0.0.40
codegen_flags: <defaults>
</compile_context>

<pallas_src>
import jax
import jax.numpy as jnp
from jax.experimental import pallas as pl
from jax.experimental.pallas import tpu as pltpu

_LRELU_SLOPE = 0.2


def _leaky_relu(x, slope=_LRELU_SLOPE):
    # For 0 < slope < 1, LeakyReLU(x) == max(x, slope*x): 2 VPU ops.
    return jnp.maximum(x, slope * x)


def discriminator_kernel(x_ref, w1_ref, b1_ref, w2_ref, b2_ref, w3_ref, b3_ref,
                         out_ref):
    """Fused 3-layer MLP over one row tile, computed transposed (lane-dense).

    x_ref : (TILE, pacdim) f32   streamed per grid step (cast to bf16 here)
    w1_ref: (d0, pacdim)   bf16  resident (torch layout: (out, in))
    w2_ref: (d1, d0)       bf16  resident
    w3_ref: (1, d1)        f32   resident
    b*_ref: (out, 1)       f32   resident
    out_ref: (1, TILE)     f32   lane-dense store; wrapper reshapes to (rows, 1)
    """
    # In-kernel cast: x's only HBM pass is the kernel's own streamed read.
    x_bf = x_ref[...].astype(jnp.bfloat16)

    # Layer 1 (transposed): h1 = W1 @ x^T -> (d0, TILE). Contraction over the
    # shared last dim == the q @ k^T pattern; no explicit transpose of x.
    h = jax.lax.dot_general(
        w1_ref[...], x_bf,
        dimension_numbers=(((1,), (1,)), ((), ())),
        preferred_element_type=jnp.float32)
    h = _leaky_relu(h + b1_ref[...])        # Dropout(0.5) == identity in eval

    # Layer 2: bf16 x bf16 MXU matmul, f32 accumulate, lane-dense (d1, TILE).
    h = jnp.dot(w2_ref[...], h.astype(jnp.bfloat16),
                preferred_element_type=jnp.float32)
    h = _leaky_relu(h + b2_ref[...])

    # Output head Linear(d1, 1): (1, d1) @ (d1, TILE) -> (1, TILE).
    y = jnp.dot(w3_ref[...], h, preferred_element_type=jnp.float32) + b3_ref[...]
    out_ref[...] = y.astype(out_ref.dtype)


def _choose_row_tile(rows, tile_rows):
    """Large row tile; multiple of 128 when tiling; >=2 grid steps for big
    inputs so v7x can shard the parallel row axis across both TensorCores."""
    if rows < 256:
        return rows                          # single block == full array dims
    tr = min(tile_rows, rows)
    tr = max(128, (tr // 128) * 128)         # lane-dense out tile must be %128
    if tr >= rows:                           # force >=2 grid steps (v7x megacore)
        tr = max(128, (((rows + 1) // 2) // 128) * 128)
    return tr


def discriminator_forward(x, params, pac, *, tile_rows=8192):
    """Eval-mode Discriminator forward. x: (B, input_dim) f32 -> (B//pac, 1)."""
    B, input_dim = x.shape
    assert B % pac == 0, "batch must be divisible by pac"
    pacdim = input_dim * pac
    rows = B // pac

    # torch .view(-1, pacdim): pack `pac` consecutive samples per row. Kept f32.
    x_packed = x.reshape(rows, pacdim)

    w1, b1, w2, b2, w3, b3 = params            # torch layout: (out, in), (out,)
    d0 = w1.shape[0]
    d1 = w2.shape[0]

    w1_bf = w1.astype(jnp.bfloat16)            # (d0, pacdim)
    w2_bf = w2.astype(jnp.bfloat16)            # (d1, d0)
    w3_f = w3.astype(jnp.float32)              # (1, d1)
    b1_c = b1.reshape(d0, 1).astype(jnp.float32)
    b2_c = b2.reshape(d1, 1).astype(jnp.float32)
    b3_c = b3.reshape(1, 1).astype(jnp.float32)

    tr = _choose_row_tile(rows, tile_rows)
    grid = (pl.cdiv(rows, tr),)

    flops = 2 * rows * (pacdim * d0 + d0 * d1 + d1)
    bytes_accessed = (rows * pacdim * 4              # f32 x (streamed, only pass)
                      + rows * 4                     # f32 out
                      + (pacdim * d0 + d0 * d1) * 2  # bf16 weights
                      + (d0 + d1 + d1 + 1) * 4)      # f32 biases + head row

    out_t = pl.pallas_call(
        discriminator_kernel,
        out_shape=jax.ShapeDtypeStruct((1, rows), jnp.float32),
        grid=grid,
        in_specs=[
            pl.BlockSpec((tr, pacdim), lambda i: (i, 0)),   # x: streamed tiles
            pl.BlockSpec((d0, pacdim), lambda i: (0, 0)),   # w1: resident
            pl.BlockSpec((d0, 1), lambda i: (0, 0)),        # b1
            pl.BlockSpec((d1, d0), lambda i: (0, 0)),       # w2
            pl.BlockSpec((d1, 1), lambda i: (0, 0)),        # b2
            pl.BlockSpec((1, d1), lambda i: (0, 0)),        # w3
            pl.BlockSpec((1, 1), lambda i: (0, 0)),         # b3
        ],
        out_specs=pl.BlockSpec((1, tr), lambda i: (0, i)),  # lane-dense output
        compiler_params=pltpu.CompilerParams(
            dimension_semantics=("parallel",),
            vmem_limit_bytes=32 * 1024 * 1024),
        cost_estimate=pl.CostEstimate(
            flops=flops, transcendentals=0, bytes_accessed=bytes_accessed),
    )(x_packed, w1_bf, b1_c, w2_bf, b2_c, w3_f, b3_c)

    return out_t.reshape(rows, 1)


def init_params(key, input_dim, discriminator_dim, pac):
    """Torch-layout Linear params: weight (out, in), bias (out,)."""
    dims = [input_dim * pac] + list(discriminator_dim) + [1]
    params = []
    for i in range(len(dims) - 1):
        din, dout = dims[i], dims[i + 1]
        key, kw, kb = jax.random.split(key, 3)
        bound = 1.0 / float(din) ** 0.5
        w = jax.random.uniform(kw, (dout, din), jnp.float32, -bound, bound)
        b = jax.random.uniform(kb, (dout,), jnp.float32, -bound, bound)
        params += [w, b]
    return tuple(params)


def reference_forward(x, params, pac):
    """Plain-JAX f32 reference (eval mode) for correctness check."""
    B, input_dim = x.shape
    h = x.reshape(B // pac, input_dim * pac)
    w1, b1, w2, b2, w3, b3 = params
    h = _leaky_relu(h @ w1.T + b1)
    h = _leaky_relu(h @ w2.T + b2)
    return h @ w3.T + b3


if __name__ == "__main__":
    pac = 10
    input_dim = 8
    discriminator_dim = (32, 32)

    key = jax.random.PRNGKey(0)
    key, kp = jax.random.split(key)
    params = init_params(kp, input_dim, discriminator_dim, pac)

    # Case 1: small single-block path (block shapes == full array dims).
    batch = 20                                    # -> 2 packed rows
    key, kx = jax.random.split(key)
    x = jax.random.normal(kx, (batch, input_dim), jnp.float32)
    out = jax.block_until_ready(discriminator_forward(x, params, pac))
    ref = reference_forward(x, params, pac)
    assert out.shape == (batch // pac, 1), out.shape
    assert jnp.allclose(out, ref, atol=3e-2, rtol=3e-2), (out, ref)

    # Case 2: tiled path — >=2 grid steps plus a partial trailing block
    # (masked writeback), still tiny data.
    batch2 = 2600                                 # -> 260 packed rows, tile 256
    key, kx2 = jax.random.split(key)
    x2 = jax.random.normal(kx2, (batch2, input_dim), jnp.float32)
    out2 = jax.block_until_ready(discriminator_forward(x2, params, pac))
    ref2 = reference_forward(x2, params, pac)
    assert out2.shape == (batch2 // pac, 1), out2.shape
    assert jnp.allclose(out2, ref2, atol=3e-2, rtol=3e-2), (out2, ref2)

    print("KERNEL_OK")
</pallas_src>

<mosaic_0001>
module attributes {stable_mosaic.version = 11 : i64} {
  func.func @discriminator_kernel(%arg0: i32, %arg1: memref<2x80xf32, #tpu.memory_space<vmem>>, %arg2: memref<32x80xbf16, #tpu.memory_space<vmem>>, %arg3: memref<32x1xf32, #tpu.memory_space<vmem>>, %arg4: memref<32x32xbf16, #tpu.memory_space<vmem>>, %arg5: memref<32x1xf32, #tpu.memory_space<vmem>>, %arg6: memref<1x32xf32, #tpu.memory_space<vmem>>, %arg7: memref<1x1xf32, #tpu.memory_space<vmem>>, %arg8: memref<1x2xf32, #tpu.memory_space<vmem>>) attributes {dimension_semantics = [#tpu.dimension_semantics<parallel>], iteration_bounds = array<i64: 1>, scalar_prefetch = 0 : i64, scratch_operands = 0 : i64, tpu.core_type = #tpu.core_type<tc>, window_params = [{transform_indices = @transform_0, window_bounds = array<i64: 2, 80>}, {pipeline_mode = #tpu.pipeline_mode<synchronous>, transform_indices = @transform_1, window_bounds = array<i64: 32, 80>}, {pipeline_mode = #tpu.pipeline_mode<synchronous>, transform_indices = @transform_2, window_bounds = array<i64: 32, 1>}, {pipeline_mode = #tpu.pipeline_mode<synchronous>, transform_indices = @transform_3, window_bounds = array<i64: 32, 32>}, {pipeline_mode = #tpu.pipeline_mode<synchronous>, transform_indices = @transform_4, window_bounds = array<i64: 32, 1>}, {pipeline_mode = #tpu.pipeline_mode<synchronous>, transform_indices = @transform_5, window_bounds = array<i64: 1, 32>}, {pipeline_mode = #tpu.pipeline_mode<synchronous>, transform_indices = @transform_6, window_bounds = array<i64: 1, 1>}, {transform_indices = @transform_7, window_bounds = array<i64: 1, 2>}]} {
    %c0 = arith.constant 0 : index
    %c0_0 = arith.constant 0 : index
    %0 = vector.load %arg1[%c0, %c0_0] : memref<2x80xf32, #tpu.memory_space<vmem>>, vector<2x80xf32>
    %1 = arith.truncf %0 : vector<2x80xf32> to vector<2x80xbf16>
    %c0_1 = arith.constant 0 : index
    %c0_2 = arith.constant 0 : index
    %2 = vector.load %arg2[%c0_1, %c0_2] : memref<32x80xbf16, #tpu.memory_space<vmem>>, vector<32x80xbf16>
    %cst = arith.constant dense<0.000000e+00> : vector<32x2xf32>
    %3 = tpu.matmul %2, %1, %cst {dimension_numbers = #tpu.dot_dimension_numbers<[1], [1], [0], [0], [0, 0, 1, 0], [], []>} : vector<32x80xbf16>, vector<2x80xbf16>, vector<32x2xf32> -> vector<32x2xf32>
    %c0_3 = arith.constant 0 : index
    %c0_4 = arith.constant 0 : index
    %4 = vector.load %arg3[%c0_3, %c0_4] : memref<32x1xf32, #tpu.memory_space<vmem>>, vector<32x1xf32>
    %5 = vector.broadcast %4 : vector<32x1xf32> to vector<32x2xf32>
    %6 = arith.addf %3, %5 : vector<32x2xf32>
    %cst_5 = arith.constant 2.000000e-01 : f32
    %7 = vector.broadcast %cst_5 : f32 to vector<32x2xf32>
    %8 = arith.mulf %7, %6 : vector<32x2xf32>
    %9 = arith.maximumf %6, %8 : vector<32x2xf32>
    %c0_6 = arith.constant 0 : index
    %c0_7 = arith.constant 0 : index
    %10 = vector.load %arg4[%c0_6, %c0_7] : memref<32x32xbf16, #tpu.memory_space<vmem>>, vector<32x32xbf16>
    %11 = arith.truncf %9 : vector<32x2xf32> to vector<32x2xbf16>
    %cst_8 = arith.constant dense<0.000000e+00> : vector<32x2xf32>
    %12 = tpu.matmul %10, %11, %cst_8 {dimension_numbers = #tpu.dot_dimension_numbers<[1], [0], [0], [1], [0, 0, 1, 1], [], []>} : vector<32x32xbf16>, vector<32x2xbf16>, vector<32x2xf32> -> vector<32x2xf32>
    %c0_9 = arith.constant 0 : index
    %c0_10 = arith.constant 0 : index
    %13 = vector.load %arg5[%c0_9, %c0_10] : memref<32x1xf32, #tpu.memory_space<vmem>>, vector<32x1xf32>
    %14 = vector.broadcast %13 : vector<32x1xf32> to vector<32x2xf32>
    %15 = arith.addf %12, %14 : vector<32x2xf32>
    %cst_11 = arith.constant 2.000000e-01 : f32
    %16 = vector.broadcast %cst_11 : f32 to vector<32x2xf32>
    %17 = arith.mulf %16, %15 : vector<32x2xf32>
    %18 = arith.maximumf %15, %17 : vector<32x2xf32>
    %c0_12 = arith.constant 0 : index
    %c0_13 = arith.constant 0 : index
    %19 = vector.load %arg6[%c0_12, %c0_13] : memref<1x32xf32, #tpu.memory_space<vmem>>, vector<1x32xf32>
    %cst_14 = arith.constant dense<0.000000e+00> : vector<1x2xf32>
    %20 = tpu.matmul %19, %18, %cst_14 {dimension_numbers = #tpu.dot_dimension_numbers<[1], [0], [0], [1], [0, 0, 1, 1], [], []>} : vector<1x32xf32>, vector<32x2xf32>, vector<1x2xf32> -> vector<1x2xf32>
    %c0_15 = arith.constant 0 : index
    %c0_16 = arith.constant 0 : index
    %21 = vector.load %arg7[%c0_15, %c0_16] : memref<1x1xf32, #tpu.memory_space<vmem>>, vector<1x1xf32>
    %22 = vector.broadcast %21 : vector<1x1xf32> to vector<1x2xf32>
    %23 = arith.addf %20, %22 : vector<1x2xf32>
    %c0_17 = arith.constant 0 : index
    %c0_18 = arith.constant 0 : index
    %24 = vector.load %arg8[%c0_17, %c0_18] : memref<1x2xf32, #tpu.memory_space<vmem>>, vector<1x2xf32>
    tpu.vector_store %arg8[%c0_17, %c0_18], %23 {strides = array<i32>} : memref<1x2xf32, #tpu.memory_space<vmem>>, vector<1x2xf32>,
    return
  }
  func.func @transform_0(%arg0: i32) -> (i32, i32) {
    %c0_i32 = arith.constant 0 : i32
    %c0_i32_0 = arith.constant 0 : i32
    return %arg0, %c0_i32 : i32, i32
  }
  func.func @transform_1(%arg0: i32) -> (i32, i32) {
    %c0_i32 = arith.constant 0 : i32
    %c0_i32_0 = arith.constant 0 : i32
    %c0_i32_1 = arith.constant 0 : i32
    return %c0_i32, %c0_i32_0 : i32, i32
  }
  func.func @transform_2(%arg0: i32) -> (i32, i32) {
    %c0_i32 = arith.constant 0 : i32
    %c0_i32_0 = arith.constant 0 : i32
    %c0_i32_1 = arith.constant 0 : i32
    return %c0_i32, %c0_i32_0 : i32, i32
  }
  func.func @transform_3(%arg0: i32) -> (i32, i32) {
    %c0_i32 = arith.constant 0 : i32
    %c0_i32_0 = arith.constant 0 : i32
    %c0_i32_1 = arith.constant 0 : i32
    return %c0_i32, %c0_i32_0 : i32, i32
  }
  func.func @transform_4(%arg0: i32) -> (i32, i32) {
    %c0_i32 = arith.constant 0 : i32
    %c0_i32_0 = arith.constant 0 : i32
    %c0_i32_1 = arith.constant 0 : i32
    return %c0_i32, %c0_i32_0 : i32, i32
  }
  func.func @transform_5(%arg0: i32) -> (i32, i32) {
    %c0_i32 = arith.constant 0 : i32
    %c0_i32_0 = arith.constant 0 : i32
    %c0_i32_1 = arith.constant 0 : i32
    return %c0_i32, %c0_i32_0 : i32, i32
  }
  func.func @transform_6(%arg0: i32) -> (i32, i32) {
    %c0_i32 = arith.constant 0 : i32
    %c0_i32_0 = arith.constant 0 : i32
    %c0_i32_1 = arith.constant 0 : i32
    return %c0_i32, %c0_i32_0 : i32, i32
  }
  func.func @transform_7(%arg0: i32) -> (i32, i32) {
    %c0_i32 = arith.constant 0 : i32
    %c0_i32_0 = arith.constant 0 : i32
    return %c0_i32, %arg0 : i32, i32
  }
}

</mosaic_0001>

<llo_original>
// kernel: tpu_custom_call.1
$region0: #{tpu_custom_call.1}
  #allocation0 [shape = 'u32[]', space=smem, size = 0x4, offset = 0x4, fixed_abs, tag = 'smem constant byte address 0x4 - core index']
  #allocation1 [shape = 'u32[72,128]{1,0:T(1,128)}', space=vmem, size = 0x9000, scoped, tag = 'internal scratch']
  #allocation2 [shape = 'f32[1,1]{1,0:T(1,128)S(1)}', space=vmem, size = 0x200, scoped, tag = 'scoped memory for tpu_custom_call.1']
  %s0 = inlined_call_operand.vmem [shape: f32[2,80], index: 0, kind: input, shape index: {}]
  %s1 = inlined_call_operand.vmem [shape: bf16[32,80], index: 1, kind: input, shape index: {}]
  %s2 = inlined_call_operand.vmem [shape: f32[32,1], index: 2, kind: input, shape index: {}]
  %s3 = inlined_call_operand.vmem [shape: bf16[32,32], index: 3, kind: input, shape index: {}]
  %s4 = inlined_call_operand.vmem [shape: f32[32,1], index: 4, kind: input, shape index: {}]
  %s5 = inlined_call_operand.vmem [shape: f32[1,32], index: 5, kind: input, shape index: {}]
  %s6 = inlined_call_operand.<no memory space> [shape: f32[1,1], index: 6, kind: input, shape index: {}]
  %s7 = inlined_call_operand.hbm [shape: f32[1,2], index: 7, kind: output, shape index: {}]
  %s8 = sld [smem:[#allocation0]]
  $region38: #{tpu_custom_call.1} parent=0
    _
  %s10 = ssub.s32 1, %s8
  %s11 = scalar_select 0, %s10, %s8
  %v12 = vstv %s6
  %13 = vst [vmem:[#allocation2] sm:$0x1] %v12
  $region1: #{tpu_custom_call.1} parent=0
    #allocation3 [shape = 'u8[512]{0}', space=vmem, size = 0x400, scoped, tag = 'output window, operand 0, single buffered']
    #allocation4 [shape = 's32[1]{0}', space=sflag, size = 0x4, scoped, tag = 'scoped memory for tpu_custom_call.1']
    %14 = vsyncpa [#allocation4], 0
    // Predicated region
    $region2: #{tpu_custom_call.1} parent=1 // pred_check
      _
    $region3: #{tpu_custom_call.1} parent=1 // pred_check_branch
      %16 = sbr.rel (0) target = $region5
    $region4: #{tpu_custom_call.1} parent=1 // pred_region
      _
    $region5: #{tpu_custom_call.1} parent=1 // pred_fallthru
      _
    // Predicated region
    $region6: #{tpu_custom_call.1} parent=1 // pred_check
      _
    $region7: #{tpu_custom_call.1} parent=1 // pred_check_branch
      %18 = sbr.rel (0) target = $region9
    $region8: #{tpu_custom_call.1} parent=1 // pred_region
      _
    $region9: #{tpu_custom_call.1} parent=1 // pred_fallthru
      _
    // Predicated region
    $region10: #{tpu_custom_call.1} parent=1 // pred_check
      _
    $region11: #{tpu_custom_call.1} parent=1 // pred_check_branch
      %20 = sbr.rel (0) target = $region13
    $region12: #{tpu_custom_call.1} parent=1 // pred_region
      _
    $region13: #{tpu_custom_call.1} parent=1 // pred_fallthru
      _
    // Predicated region
    $region14: #{tpu_custom_call.1} parent=1 // pred_check
      _
    $region15: #{tpu_custom_call.1} parent=1 // pred_check_branch
      %22 = sbr.rel (0) target = $region17
    $region16: #{tpu_custom_call.1} parent=1 // pred_region
      _
    $region17: #{tpu_custom_call.1} parent=1 // pred_fallthru
      _
    // Predicated region
    $region18: #{tpu_custom_call.1} parent=1 // pred_check
      _
    $region19: #{tpu_custom_call.1} parent=1 // pred_check_branch
      %24 = sbr.rel (0) target = $region21
    $region20: #{tpu_custom_call.1} parent=1 // pred_region
      _
    $region21: #{tpu_custom_call.1} parent=1 // pred_fallthru
      _
    // Predicated region
    $region22: #{tpu_custom_call.1} parent=1 // pred_check
      _
    $region23: #{tpu_custom_call.1} parent=1 // pred_check_branch
      %26 = sbr.rel (0) target = $region25
    $region24: #{tpu_custom_call.1} parent=1 // pred_region
      _
    $region25: #{tpu_custom_call.1} parent=1 // pred_fallthru
      _
    // Predicated region
    $region26: #{tpu_custom_call.1} parent=1 // pred_check
      _
    $region27: #{tpu_custom_call.1} parent=1 // pred_check_branch
      %28 = sbr.rel (0) target = $region29
    $region28: #{tpu_custom_call.1} parent=1 // pred_region
      _
    $region29: #{tpu_custom_call.1} parent=1 // pred_fallthru
      _
    %v30 = vld [vmem:[%s0] sm:$0x3]
    %v31 = vpack.c.bf16 %v30, %v30
    %v32 = vld [vmem:[%s1] sm:$0xf]
    %v33 = vld [vmem:[%s1 + $0x4] sm:$0xf]
    %v34 = vld [vmem:[%s1 + $0x8] sm:$0xf]
    %v35 = vld [vmem:[%s1 + $0xc] sm:$0xf]
    %v36 = vld [vmem:[%s2] sm:$0xff]
    %v37 = vld [vmem:[%s2 + $0x8] sm:$0xff]
    %v38 = vld [vmem:[%s2 + $0x10] sm:$0xff]
    %v39 = vld [vmem:[%s2 + $0x18] sm:$0xff]
    %41 = vset.pattern.permute.xlu0 0
    %42 = vperm.xlu0 %41, %v36
    %v43 = vpop.permute.xlu0 %42
    %46 = vset.pattern.permute.xlu0 0
    %47 = vperm.xlu0 %46, %v37
    %v48 = vpop.permute.xlu0 %47
    %51 = vset.pattern.permute.xlu0 0
    %52 = vperm.xlu0 %51, %v38
    %v53 = vpop.permute.xlu0 %52
    %56 = vset.pattern.permute.xlu0 0
    %57 = vperm.xlu0 %56, %v39
    %v58 = vpop.permute.xlu0 %57
    %v64 = vunpack.c.l.b16 %v32
    %v65 = vunpack.c.l.b16 %v33
    %v66 = vunpack.c.l.b16 %v34
    %v67 = vunpack.c.l.b16 %v35
    %v68 = vpack.c.b16 %v65, %v64
    %v69 = vpack.c.b16 %v67, %v66
    %vm70 = vcmask 654336
    %v72 = vsel %vm70, %v68, 0
    %v75 = vsel %vm70, %v69, 0
    %v78 = vsel %vm70, %v31, 0
    %80 = vmatpush.bf16.xpose.msra.mxu0 0
    %81 = vmatpush.bf16.xpose.msra.mxu0 0
    %82 = vmatpush.bf16.xpose.msra.mxu0 0
    %83 = vmatpush.bf16.xpose.msra.mxu0 0
    %84 = vmatpush.bf16.xpose.msra.mxu0 0
    %85 = vmatpush.bf16.xpose.msra.mxu0 0
    %86 = vmatpush.bf16.xpose.msra.mxu0 0
    %87 = vmatpush.bf16.xpose.msra.mxu0 %v78
    %88 = vmatmul.bf16.gmra.mxu0 %v72
    %v89 = vpop.f32.mrf.mxu0
    %v90 = vadd.f32 %v43, %v89
    %v91 = vpop.f32.mrf.mxu0
    %v92 = vadd.f32 %v48, %v91
    %93 = vmatmul.bf16.gmra.mxu0 %v75
    %v94 = vpop.f32.mrf.mxu0
    %v95 = vadd.f32 %v53, %v94
    %v96 = vpop.f32.mrf.mxu0
    %v97 = vadd.f32 %v58, %v96
    %98 = vdwg.mxu0
    %v99 = vmul.f32 %v90, 0.2
    %v100 = vmul.f32 %v92, 0.2
    %v101 = vmul.f32 %v95, 0.2
    %v102 = vmul.f32 %v97, 0.2
    %v103 = vmax.f32 %v90, %v99
    %v104 = vmax.f32 %v92, %v100
    %v105 = vmax.f32 %v95, %v101
    %v106 = vmax.f32 %v97, %v102
    %v107 = vld [vmem:[%s3] sm:$0xf]
    %v108 = vld [vmem:[%s3 + $0x4] sm:$0xf]
    %v109 = vld [vmem:[%s3 + $0x8] sm:$0xf]
    %v110 = vld [vmem:[%s3 + $0xc] sm:$0xf]
    %v111 = vpack.c.bf16 %v104, %v103
    %v112 = vpack.c.bf16 %v106, %v105
    %v113 = vld [vmem:[%s4] sm:$0xff]
    %v114 = vld [vmem:[%s4 + $0x8] sm:$0xff]
    %v115 = vld [vmem:[%s4 + $0x10] sm:$0xff]
    %v116 = vld [vmem:[%s4 + $0x18] sm:$0xff]
    %118 = vset.pattern.permute.xlu0 0
    %119 = vperm.xlu0 %118, %v113
    %v120 = vpop.permute.xlu0 %119
    %123 = vset.pattern.permute.xlu0 0
    %124 = vperm.xlu0 %123, %v114
    %v125 = vpop.permute.xlu0 %124
    %128 = vset.pattern.permute.xlu0 0
    %129 = vperm.xlu0 %128, %v115
    %v130 = vpop.permute.xlu0 %129
    %133 = vset.pattern.permute.xlu0 0
    %134 = vperm.xlu0 %133, %v116
    %v135 = vpop.permute.xlu0 %134
    %v141 = vunpack.c.l.b16 %v107
    %v142 = vunpack.c.l.b16 %v108
    %v143 = vunpack.c.l.b16 %v109
    %v144 = vunpack.c.l.b16 %v110
    %v145 = vpack.c.b16 %v142, %v141
    %v146 = vpack.c.b16 %v144, %v143
    %vm147 = vcmask 261120
    %v149 = vsel %vm147, %v145, 0
    %v152 = vsel %vm147, %v146, 0
    %154 = vmatpush.bf16.msra.mxu0 0
    %155 = vmatpush.bf16.msra.mxu0 0
    %156 = vmatpush.bf16.msra.mxu0 0
    %157 = vmatpush.bf16.msra.mxu0 0
    %158 = vmatpush.bf16.msra.mxu0 0
    %159 = vmatpush.bf16.msra.mxu0 0
    %160 = vmatpush.bf16.msra.mxu0 %v112
    %161 = vmatpush.bf16.msra.mxu0 %v111
    %162 = vmatmul.bf16.gmra.mxu0 %v149
    %v163 = vpop.f32.mrf.mxu0
    %v164 = vadd.f32 %v120, %v163
    %v165 = vpop.f32.mrf.mxu0
    %v166 = vadd.f32 %v125, %v165
    %167 = vmatmul.bf16.gmra.mxu0 %v152
    %v168 = vpop.f32.mrf.mxu0
    %v169 = vadd.f32 %v130, %v168
    %v170 = vpop.f32.mrf.mxu0
    %v171 = vadd.f32 %v135, %v170
    %172 = vdwg.mxu0
    %v173 = vmul.f32 %v164, 0.2
    %v174 = vmul.f32 %v166, 0.2
    %v175 = vmul.f32 %v169, 0.2
    %v176 = vmul.f32 %v171, 0.2
    %v177 = vmax.f32 %v164, %v173
    %v178 = vmax.f32 %v166, %v174
    %v179 = vmax.f32 %v169, %v175
    %v180 = vmax.f32 %v171, %v176
    %v181 = vld [vmem:[%s5] sm:$0x1]
    %v182 = vld [vmem:[#allocation2] sm:$0x1]
    %184 = vset.pattern.permute.xlu0 0
    %185 = vperm.xlu0 %184, %v182
    %v186 = vpop.permute.xlu0 %185
    %v188 = vperm.slane %v186, 0
    %v190 = vsel %vm147, %v181, 0
    %192 = vmatpush.msra.mxu0 0.0
    %193 = vmatpush.msra.mxu0 0.0
    %194 = vmatpush.msra.mxu0 0.0
    %195 = vmatpush.msra.mxu0 0.0
    %196 = vmatpush.msra.mxu0 0.0
    %197 = vmatpush.msra.mxu0 0.0
    %198 = vmatpush.msra.mxu0 0.0
    %199 = vmatpush.msra.mxu0 0.0
    %200 = vmatpush.msra.mxu0 0.0
    %201 = vmatpush.msra.mxu0 0.0
    %202 = vmatpush.msra.mxu0 0.0
    %203 = vmatpush.msra.mxu0 0.0
    %204 = vmatpush.msra.mxu0 %v180
    %205 = vmatpush.msra.mxu0 %v179
    %206 = vmatpush.msra.mxu0 %v178
    %207 = vmatpush.msra.mxu0 %v177
    %208 = vmatmul.f32.gmra.mxu0 %v190
    %v209 = vpop.f32.mrf.mxu0
    %v210 = vadd.f32 %v188, %v209
    %211 = vdwg.mxu0
    %vm212 = vcmask 8192
    %213 = vst.msk [vmem:[#allocation3] sm:$0x1] %vm212, %v210
    // Predicated region
    $region30: #{tpu_custom_call.1} parent=1 // pred_check
      _
    $region31: #{tpu_custom_call.1} parent=1 // pred_check_branch
      %215 = sbr.rel (0) target = $region33
    $region32: #{tpu_custom_call.1} parent=1 // pred_region
      %217 = vsyncadd [#allocation4], 0
      %s219 = sshll.u32 [#allocation3], 4
      %s220 = int_to_ptr.vmem [resolvable:$true] %s219
      %s221 = sshll.u32 %s7, 4
      %s222 = int_to_ptr.hbm [resolvable:$true] %s221
      %224 = dma.vmem_to_hbm [thread:$0]  %s220, 16, %s222, [#allocation4]
    $region33: #{tpu_custom_call.1} parent=1 // pred_fallthru
      _
    // Predicated region
    $region34: #{tpu_custom_call.1} parent=1 // pred_check
      _
    $region35: #{tpu_custom_call.1} parent=1 // pred_check_branch
      %226 = sbr.rel (0) target = $region37
    $region36: #{tpu_custom_call.1} parent=1 // pred_region
      %228 = dma.done [#allocation4], 16
    $region37: #{tpu_custom_call.1} parent=1 // pred_fallthru
      _
    %229 = vsyncpa [#allocation4], 1

</llo_original>
